<compile_context>
chip_gen: v7x
topology: tpu7x:2x2x1
jax: 0.10.0
libtpu: 0.0.40
codegen_flags: <defaults>
</compile_context>

<pallas_src>
import math

import jax
import jax.numpy as jnp
from jax.experimental import pallas as pl
from jax.experimental.pallas import tpu as pltpu


def _round_up(x, m):
    return ((x + m - 1) // m) * m


def _time_attn_kernel(x_ref, q_ref, bias_ref, o_ref):
    # x_ref    : (BB, S, dim)  streamed activations ("out" in the torch code)
    # q_ref    : (BB, dim)     precomputed (hn @ fc_q.T @ fc_k) / temperature
    # bias_ref : (BB, S)       beta * fc_rp score, -inf at masked positions
    # o_ref    : (BB, S)       softmax attention weights
    x = x_ref[...].astype(jnp.float32)
    q = q_ref[...].astype(jnp.float32)

    # attn_0[b, s] = sum_d q[b, d] * x[b, s, d]
    # Broadcast-multiply + reduce over the minor (lane) axis; ~0.5 FLOP/byte so
    # this is fully hidden under the HBM stream of x on every TPU generation.
    attn0 = jnp.sum(x * q[:, None, :], axis=-1)          # (BB, S), f32

    attn = attn0 + bias_ref[...]                         # rel/pos bias + pad mask

    # softmax over the sequence axis, on sublane-dense (BB, S) slabs, all f32
    m = jnp.max(attn, axis=-1, keepdims=True)
    e = jnp.exp(attn - m)
    s = jnp.sum(e, axis=-1, keepdims=True)
    o_ref[...] = e * pl.reciprocal(s, approx=True)


def time_attn_forward(params, out, hn, pos_ind, rel_dt, abs_dt, *, beta,
                      block_b=None, stream_bf16="auto"):
    # abs_dt is unused in the torch forward as well.
    del abs_dt
    B, S, dim = out.shape
    time_dim = params["pos_emb"].shape[1]
    temperature = math.sqrt(float(dim))

    # ---- algebraic fusions, done once in plain JAX on tiny tensors ----
    # attn_0 = (out @ fc_k.T) . (hn @ fc_q.T) / temp  ==  out . q, with
    # q = (hn @ fc_q.T) @ fc_k / temp                          -> (B, dim)
    q = ((hn @ params["fc_q"].T) @ params["fc_k"]) * (1.0 / temperature)

    # Fold fc_rp (+ beta, + pad mask) into 1-D score tables over the 512 rows.
    w_rp = params["fc_rp"][0]                                  # (2*time_dim,)
    rel_tab = params["rel_emb"] @ w_rp[:time_dim]              # (512,)
    pos_tab = params["pos_emb"] @ w_rp[time_dim:]              # (512,)
    bias = beta * (rel_tab[rel_dt] + pos_tab[pos_ind])         # (B, S)
    bias = jnp.where(pos_ind == 0, -jnp.inf, bias).astype(jnp.float32)

    # bf16 streaming only when it doesn't add an HBM pass (producer already
    # supplies bf16); softmax math stays f32 inside the kernel regardless.
    if stream_bf16 == "auto":
        stream_bf16 = (out.dtype == jnp.bfloat16)
    if stream_bf16:
        out = out.astype(jnp.bfloat16)
        q = q.astype(jnp.bfloat16)
    else:
        q = q.astype(out.dtype)
    itemsize = jnp.dtype(out.dtype).itemsize

    # ---- batch blocking: BB rows per grid step ----
    # VMEM tiles the two minor dims to (8, 128), so the resident x block is
    # BB * round_up(S, 8) * round_up(dim, 128) * itemsize bytes (NOT S*dim).
    padded_row = _round_up(S, 8) * _round_up(dim, 128) * itemsize
    if block_b is None:
        target = 8 << 20                       # ~8 MiB per streamed buffer
        bb = max(1, target // padded_row)
        if B >= 8:
            # keep the grid >= ~4 steps for pipeline overlap + megacore sharding
            bb = min(bb, -(-B // 4))
            bb = max(8, (bb // 8) * 8)
        block_b = min(int(bb), B)
    BB = max(1, min(int(block_b), B))
    if BB < B and BB % 8 != 0:
        # (8,128) rule: a non-full second-to-last block dim must be a multiple of 8
        BB = max(8, (BB // 8) * 8)
        BB = min(BB, B)

    grid = (pl.cdiv(B, BB),)

    # Explicit scoped-VMEM budget (double-buffered blocks + headroom), capped
    # safely below v7x's 64 MiB physical VMEM.
    est = 2 * (BB * padded_row
               + _round_up(BB, 8) * _round_up(dim, 128) * itemsize      # q
               + 2 * _round_up(BB, 8) * _round_up(S, 128) * 4)          # bias+out
    vmem_limit = int(min(48 << 20, max(32 << 20, est + (8 << 20))))

    attn = pl.pallas_call(
        _time_attn_kernel,
        out_shape=jax.ShapeDtypeStruct((B, S), jnp.float32),
        grid_spec=pl.GridSpec(
            grid=grid,
            in_specs=[
                pl.BlockSpec((BB, S, dim), lambda b: (b, 0, 0)),   # out (streamed)
                pl.BlockSpec((BB, dim), lambda b: (b, 0)),         # q
                pl.BlockSpec((BB, S), lambda b: (b, 0)),           # bias
            ],
            out_specs=pl.BlockSpec((BB, S), lambda b: (b, 0)),
        ),
        compiler_params=pltpu.CompilerParams(
            dimension_semantics=("parallel",),
            vmem_limit_bytes=vmem_limit),
    )(out, q, bias)

    return attn


def init_params(key, dim, time_dim):
    ks = jax.random.split(key, 5)
    u = lambda k, shape: jax.random.uniform(k, shape, jnp.float32, -0.1, 0.1)
    return {
        "pos_emb": u(ks[0], (512, time_dim)),
        "rel_emb": u(ks[1], (512, time_dim)),
        "fc_k": u(ks[2], (dim, dim)),        # (out_features, in_features)
        "fc_q": u(ks[3], (dim, dim)),
        "fc_rp": u(ks[4], (1, 2 * time_dim)),
        "rate": jnp.ones((1,), jnp.float32),  # unused in forward (as in torch)
    }


def _reference(params, out, hn, pos_ind, rel_dt, beta):
    dim = out.shape[-1]
    temperature = jnp.sqrt(jnp.float32(dim))
    pad_mask = pos_ind == 0
    pos_e = params["pos_emb"][pos_ind]
    rel_e = params["rel_emb"][rel_dt]
    attn_k = out @ params["fc_k"].T
    attn_q = hn @ params["fc_q"].T
    attn_0 = jnp.einsum("bsd,bd->bs", attn_k, attn_q) / temperature
    attn_1 = jnp.einsum("bst,t->bs",
                        jnp.concatenate([rel_e, pos_e], -1), params["fc_rp"][0])
    attn = attn_0 + beta * attn_1
    attn = jnp.where(pad_mask, -jnp.inf, attn)
    return jax.nn.softmax(attn, axis=1)


if __name__ == "__main__":
    B, S, dim, time_dim = 2, 8, 32, 16
    beta = 0.5

    key = jax.random.PRNGKey(0)
    kp, k1, k2, k3 = jax.random.split(key, 4)

    params = init_params(kp, dim, time_dim)

    out = jax.random.normal(k1, (B, S, dim), jnp.float32)
    hn = jax.random.normal(k2, (B, dim), jnp.float32)
    # pos_ind == 0 marks padding positions (each row has at least one valid pos)
    pos_ind = jnp.array([[1, 2, 3, 4, 0, 0, 0, 0],
                         [5, 6, 7, 0, 0, 0, 0, 0]], dtype=jnp.int32)
    rel_dt = jax.random.randint(k3, (B, S), 1, 100, dtype=jnp.int32)
    abs_dt = jnp.zeros((B, S), jnp.int32)  # unused by the forward pass

    attn = time_attn_forward(params, out, hn, pos_ind, rel_dt, abs_dt, beta=beta)
    attn = jax.block_until_ready(attn)

    ref = _reference(params, out, hn, pos_ind, rel_dt, beta)
    assert attn.shape == (B, S)
    # tolerance loosened from 1e-5 because of the approx (EUP) reciprocal in the
    # softmax normalization; everything else is exact f32.
    assert jnp.allclose(attn, ref, atol=2e-3, rtol=2e-3), (attn, ref)

    print("KERNEL_OK")
</pallas_src>

<mosaic_0001>
module attributes {stable_mosaic.version = 11 : i64} {
  func.func @_time_attn_kernel(%arg0: i32, %arg1: memref<2x8x32xf32, #tpu.memory_space<vmem>>, %arg2: memref<2x32xf32, #tpu.memory_space<vmem>>, %arg3: memref<2x8xf32, #tpu.memory_space<vmem>>, %arg4: memref<2x8xf32, #tpu.memory_space<vmem>>) attributes {dimension_semantics = [#tpu.dimension_semantics<parallel>], iteration_bounds = array<i64: 1>, scalar_prefetch = 0 : i64, scratch_operands = 0 : i64, tpu.core_type = #tpu.core_type<tc>, window_params = [{transform_indices = @transform_0, window_bounds = array<i64: 2, 8, 32>}, {transform_indices = @transform_1, window_bounds = array<i64: 2, 32>}, {transform_indices = @transform_2, window_bounds = array<i64: 2, 8>}, {transform_indices = @transform_3, window_bounds = array<i64: 2, 8>}]} {
    %c0 = arith.constant 0 : index
    %c0_0 = arith.constant 0 : index
    %c0_1 = arith.constant 0 : index
    %0 = vector.load %arg1[%c0, %c0_0, %c0_1] : memref<2x8x32xf32, #tpu.memory_space<vmem>>, vector<2x8x32xf32>
    %c0_2 = arith.constant 0 : index
    %c0_3 = arith.constant 0 : index
    %1 = vector.load %arg2[%c0_2, %c0_3] : memref<2x32xf32, #tpu.memory_space<vmem>>, vector<2x32xf32>
    %2 = vector.shape_cast %1 : vector<2x32xf32> to vector<2x1x32xf32>
    %3 = vector.broadcast %2 : vector<2x1x32xf32> to vector<2x8x32xf32>
    %4 = arith.mulf %0, %3 : vector<2x8x32xf32>
    %cst = arith.constant dense<0.000000e+00> : vector<2x8xf32>
    %5 = vector.multi_reduction <add>, %4, %cst [2] : vector<2x8x32xf32> to vector<2x8xf32>
    %c0_4 = arith.constant 0 : index
    %c0_5 = arith.constant 0 : index
    %6 = vector.load %arg3[%c0_4, %c0_5] : memref<2x8xf32, #tpu.memory_space<vmem>>, vector<2x8xf32>
    %7 = arith.addf %5, %6 : vector<2x8xf32>
    %cst_6 = arith.constant dense<0xFF800000> : vector<2xf32>
    %8 = vector.multi_reduction <maximumf>, %7, %cst_6 [1] : vector<2x8xf32> to vector<2xf32>
    %9 = vector.shape_cast %8 : vector<2xf32> to vector<2x1xf32>
    %10 = vector.broadcast %9 : vector<2x1xf32> to vector<2x8xf32>
    %11 = arith.subf %7, %10 : vector<2x8xf32>
    %12 = math.exp %11 : vector<2x8xf32>
    %cst_7 = arith.constant dense<0.000000e+00> : vector<2xf32>
    %13 = vector.multi_reduction <add>, %12, %cst_7 [1] : vector<2x8xf32> to vector<2xf32>
    %14 = vector.shape_cast %13 : vector<2xf32> to vector<2x1xf32>
    %15 = tpu.reciprocal %14 {approx = true} : vector<2x1xf32> -> vector<2x1xf32>
    %16 = vector.broadcast %15 : vector<2x1xf32> to vector<2x8xf32>
    %17 = arith.mulf %12, %16 : vector<2x8xf32>
    %c0_8 = arith.constant 0 : index
    %c0_9 = arith.constant 0 : index
    %18 = vector.load %arg4[%c0_8, %c0_9] : memref<2x8xf32, #tpu.memory_space<vmem>>, vector<2x8xf32>
    tpu.vector_store %arg4[%c0_8, %c0_9], %17 {strides = array<i32>} : memref<2x8xf32, #tpu.memory_space<vmem>>, vector<2x8xf32>,
    return
  }
  func.func @transform_0(%arg0: i32) -> (i32, i32, i32) {
    %c0_i32 = arith.constant 0 : i32
    %c0_i32_0 = arith.constant 0 : i32
    %c0_i32_1 = arith.constant 0 : i32
    return %arg0, %c0_i32, %c0_i32_0 : i32, i32, i32
  }
  func.func @transform_1(%arg0: i32) -> (i32, i32) {
    %c0_i32 = arith.constant 0 : i32
    %c0_i32_0 = arith.constant 0 : i32
    return %arg0, %c0_i32 : i32, i32
  }
  func.func @transform_2(%arg0: i32) -> (i32, i32) {
    %c0_i32 = arith.constant 0 : i32
    %c0_i32_0 = arith.constant 0 : i32
    return %arg0, %c0_i32 : i32, i32
  }
  func.func @transform_3(%arg0: i32) -> (i32, i32) {
    %c0_i32 = arith.constant 0 : i32
    %c0_i32_0 = arith.constant 0 : i32
    return %arg0, %c0_i32 : i32, i32
  }
}

</mosaic_0001>

<llo_original>
// kernel: tpu_custom_call.1
$region0: #{tpu_custom_call.1}
  #allocation0 [shape = 'u32[]', space=smem, size = 0x4, offset = 0x4, fixed_abs, tag = 'smem constant byte address 0x4 - core index']
  #allocation1 [shape = 'u32[144,128]{1,0:T(1,128)}', space=vmem, size = 0x12000, scoped, tag = 'internal scratch']
  %s0 = inlined_call_operand.hbm [shape: f32[2,8,32], index: 0, kind: input, shape index: {}]
  %s1 = inlined_call_operand.vmem [shape: f32[2,32], index: 1, kind: input, shape index: {}]
  %s2 = inlined_call_operand.vmem [shape: f32[2,8], index: 2, kind: input, shape index: {}]
  %s3 = inlined_call_operand.hbm [shape: f32[2,8], index: 3, kind: output, shape index: {}]
  %s4 = sld [smem:[#allocation0]]
  $region26: #{tpu_custom_call.1} parent=0
    _
  %s6 = ssub.s32 1, %s4
  %s7 = scalar_select 0, %s6, %s4
  $region1: #{tpu_custom_call.1} parent=0
    #allocation2 [shape = 'u8[8192]{0}', space=vmem, size = 0x2000, scoped, tag = 'input window, operand 0, single buffered']
    #allocation3 [shape = 's32[1]{0}', space=sflag, size = 0x4, scoped, tag = 'scoped memory for tpu_custom_call.1']
    #allocation4 [shape = 's32[1]{0}', space=sflag, size = 0x4, scoped, tag = 'scoped memory for tpu_custom_call.1']
    #allocation5 [shape = 'u8[1024]{0}', space=vmem, size = 0x400, scoped, tag = 'output window, operand 0, single buffered']
    %8 = vsyncpa [#allocation3], 0
    %9 = vsyncpa [#allocation4], 0
    // Predicated region
    $region2: #{tpu_custom_call.1} parent=1 // pred_check
      _
    $region3: #{tpu_custom_call.1} parent=1 // pred_check_branch
      %11 = sbr.rel (0) target = $region5
    $region4: #{tpu_custom_call.1} parent=1 // pred_region
      %s13 = ssub.s32 256, 256
      %14 = vsyncadd [#allocation3], %s13
      %s15 = sshll.u32 [#allocation2], 4
      %s16 = int_to_ptr.vmem [resolvable:$true] %s15
      %21 = dma.hbm_to_vmem [thread:$0]  %s0, 256, %s16, [#allocation3], 128, 128, 8
    $region5: #{tpu_custom_call.1} parent=1 // pred_fallthru
      _
    // Predicated region
    $region6: #{tpu_custom_call.1} parent=1 // pred_check
      _
    $region7: #{tpu_custom_call.1} parent=1 // pred_check_branch
      %23 = sbr.rel (0) target = $region9
    $region8: #{tpu_custom_call.1} parent=1 // pred_region
      _
    $region9: #{tpu_custom_call.1} parent=1 // pred_fallthru
      _
    // Predicated region
    $region10: #{tpu_custom_call.1} parent=1 // pred_check
      _
    $region11: #{tpu_custom_call.1} parent=1 // pred_check_branch
      %25 = sbr.rel (0) target = $region13
    $region12: #{tpu_custom_call.1} parent=1 // pred_region
      _
    $region13: #{tpu_custom_call.1} parent=1 // pred_fallthru
      _
    // Predicated region
    $region14: #{tpu_custom_call.1} parent=1 // pred_check
      _
    $region15: #{tpu_custom_call.1} parent=1 // pred_check_branch
      %27 = sbr.rel (0) target = $region17
    $region16: #{tpu_custom_call.1} parent=1 // pred_region
      %28 = dma.done [#allocation3], 256
    $region17: #{tpu_custom_call.1} parent=1 // pred_fallthru
      _
    %v29 = vld [vmem:[#allocation2] sm:$0xff]
    %v30 = vld [vmem:[#allocation2 + $0x8] sm:$0xff]
    %v31 = vld [vmem:[%s1] sm:$0x3]
    %v34 = vunpack.c.l.s4 1966171168
    %v35 = vunpack.c.0.s8 %v34
    %v36 = vlaneseq
    %v37 = vshrl.u32 %v36, 7
    %v38 = vsub.s32 %v35, %v37
    %v39 = vrot.slane %v31, %v38
    %v40 = vcombine.high %v39, %v39
    %v42 = vunpack.c.l.s4 1966171168
    %v43 = vunpack.c.0.s8 %v42
    %v44 = vlaneseq
    %v45 = vshrl.u32 %v44, 7
    %v46 = vsub.s32 %v43, %v45
    %v47 = vrot.slane %v39, %v46
    %v49 = vunpack.c.l.s4 1966171168
    %v50 = vunpack.c.0.s8 %v49
    %v51 = vlaneseq
    %v52 = vshrl.u32 %v51, 7
    %v53 = vsub.s32 %v50, %v52
    %v54 = vrot.slane %v40, %v53
    %v55 = vlaneseq
    %v56 = vshrl.u32 %v55, 7
    %v57 = vsub.s32 0, %v56
    %v58 = vrot.slane %v47, %v57
    %v59 = vlaneseq
    %v60 = vshrl.u32 %v59, 7
    %v61 = vsub.s32 0, %v60
    %v62 = vrot.slane %v54, %v61
    %v65 = vmul.f32 %v29, %v58
    %v66 = vmul.f32 %v30, %v62
    %vm67 = vcmask 261120
    %v68 = vsel %vm67, %v65, 0.0
    %69 = vadd.xlane.f32.xlu0 %v68
    %v70 = vpop.xlane.xlu0 %69
    %v71 = vsel %vm67, %v66, 0.0
    %72 = vadd.xlane.f32.xlu0 %v71
    %v73 = vpop.xlane.xlu0 %72
    %v74 = vld [vmem:[%s2] sm:$0x3]
    %v76 = vlaneseq
    %v77 = vshrl.u32 %v76, 7
    %v78 = vsub.s32 0, %v77
    %v79 = vrot.slane %v74, %v78
    %81 = vbcast.lane.b32.xlu0 %v79, 256
    %v82 = vpop.permute.xlu0 %81
    %v83 = vlaneseq
    %v84 = vshrl.u32 %v83, 7
    %v85 = vsub.s32 1, %v84
    %v86 = vrot.slane %v74, %v85
    %88 = vbcast.lane.b32.xlu0 %v86, 256
    %v89 = vpop.permute.xlu0 %88
    %v92 = vadd.f32 %v70, %v82
    %v93 = vadd.f32 %v73, %v89
    %96 = vset.pattern.permute.xlu0 0
    %97 = vperm.xlu0 %96, %v92
    %v98 = vpop.permute.xlu0 %97
    %99 = vset.pattern.permute.xlu0 0
    %100 = vperm.xlu0 %99, %v93
    %v101 = vpop.permute.xlu0 %100
    %v102 = vlaneseq
    %v103 = vand.u32 %v102, 127
    %v104 = vlaneseq
    %v105 = vshrl.u32 %v104, 7
    %v106 = vsub.s32 %v103, %v105
    %v107 = vrot.slane %v98, %v106
    %v108 = vlaneseq
    %v109 = vshrl.u32 %v108, 7
    %v110 = vsub.s32 %v103, %v109
    %v111 = vrot.slane %v101, %v110
    %vm112 = vcmask 1041409
    %v113 = vsel %vm112, %v111, %v107
    %vm115 = vcmask 58368
    %v116 = vsel %vm115, %v113, -inf
    %117 = vmax.xlane.f32.xlu0 %v116
    %v118 = vpop.xlane.xlu0 %117
    %v120 = vlaneseq
    %v121 = vshrl.u32 %v120, 7
    %v122 = vsub.s32 0, %v121
    %v123 = vrot.slane %v118, %v122
    %v124 = vlaneseq
    %v125 = vshrl.u32 %v124, 7
    %v126 = vsub.s32 1, %v125
    %v127 = vrot.slane %v118, %v126
    %v130 = vsub.f32 %v92, %v123
    %v131 = vsub.f32 %v93, %v127
    %v132 = vmul.f32 %v130, 1.442695
    %v133 = vpow.pop %v132
    %v134 = vmul.f32 %v131, 1.442695
    %v135 = vpow.pop %v134
    %138 = vset.pattern.permute.xlu0 0
    %139 = vperm.xlu0 %138, %v133
    %v140 = vpop.permute.xlu0 %139
    %141 = vset.pattern.permute.xlu0 0
    %142 = vperm.xlu0 %141, %v135
    %v143 = vpop.permute.xlu0 %142
    %v144 = vlaneseq
    %v145 = vshrl.u32 %v144, 7
    %v146 = vsub.s32 %v103, %v145
    %v147 = vrot.slane %v140, %v146
    %v148 = vlaneseq
    %v149 = vshrl.u32 %v148, 7
    %v150 = vsub.s32 %v103, %v149
    %v151 = vrot.slane %v143, %v150
    %v152 = vsel %vm112, %v151, %v147
    %v154 = vsel %vm115, %v152, 0.0
    %155 = vadd.xlane.f32.xlu0 %v154
    %v156 = vpop.xlane.xlu0 %155
    %v157 = vrcp.pop %v156
    %v159 = vlaneseq
    %v160 = vshrl.u32 %v159, 7
    %v161 = vsub.s32 0, %v160
    %v162 = vrot.slane %v157, %v161
    %v163 = vlaneseq
    %v164 = vshrl.u32 %v163, 7
    %v165 = vsub.s32 1, %v164
    %v166 = vrot.slane %v157, %v165
    %v169 = vmul.f32 %v133, %v162
    %v170 = vmul.f32 %v135, %v166
    %173 = vset.pattern.permute.xlu0 0
    %174 = vperm.xlu0 %173, %v169
    %v175 = vpop.permute.xlu0 %174
    %176 = vset.pattern.permute.xlu0 0
    %177 = vperm.xlu0 %176, %v170
    %v178 = vpop.permute.xlu0 %177
    %v179 = vlaneseq
    %v180 = vshrl.u32 %v179, 7
    %v181 = vsub.s32 %v103, %v180
    %v182 = vrot.slane %v175, %v181
    %v183 = vlaneseq
    %v184 = vshrl.u32 %v183, 7
    %v185 = vsub.s32 %v103, %v184
    %v186 = vrot.slane %v178, %v185
    %v187 = vsel %vm112, %v186, %v182
    %189 = vst.msk [vmem:[#allocation5] sm:$0x3] %vm115, %v187
    // Predicated region
    $region18: #{tpu_custom_call.1} parent=1 // pred_check
      _
    $region19: #{tpu_custom_call.1} parent=1 // pred_check_branch
      %191 = sbr.rel (0) target = $region21
    $region20: #{tpu_custom_call.1} parent=1 // pred_region
      %s193 = ssub.s32 32, 32
      %194 = vsyncadd [#allocation4], %s193
      %s196 = sshll.u32 [#allocation5], 4
      %s197 = int_to_ptr.vmem [resolvable:$true] %s196
      %199 = dma.vmem_to_hbm [thread:$0]  %s197, 32, %s3, [#allocation4]
    $region21: #{tpu_custom_call.1} parent=1 // pred_fallthru
      _
    // Predicated region
    $region22: #{tpu_custom_call.1} parent=1 // pred_check
      _
    $region23: #{tpu_custom_call.1} parent=1 // pred_check_branch
      %201 = sbr.rel (0) target = $region25
    $region24: #{tpu_custom_call.1} parent=1 // pred_region
      %202 = dma.done [#allocation4], 32
    $region25: #{tpu_custom_call.1} parent=1 // pred_fallthru
      _
    %203 = vsyncpa [#allocation3], 1
    %204 = vsyncpa [#allocation4], 1

</llo_original>
